<compile_context>
chip_gen: v7x
topology: tpu7x:2x2x1
jax: 0.10.0
libtpu: 0.0.40
codegen_flags: <defaults>
</compile_context>

<pallas_src>
import functools

import jax
import jax.numpy as jnp
from jax.experimental import pallas as pl
from jax.experimental.pallas import tpu as pltpu

_MIB = 1024 * 1024
_GROUP_TILE_LIMIT = 10 * _MIB      # max per-group tile for Path A
_BATCH_GROUP_TARGET = 4 * _MIB     # fuse batches into one tile up to ~4 MiB
_DEFAULT_SCOPED_VMEM = 12 * _MIB   # above this footprint, raise the scoped limit
_RAISED_VMEM_LIMIT = 48 * _MIB     # safe on v5e/v6e (128 MiB) and v7x (64 MiB)


def _round_up(n, m):
    return ((n + m - 1) // m) * m


# --------------------------------------------------------------------------
# Path A kernel: one (bb, T, C, HW) tile per grid step, shift done in-kernel.
# --------------------------------------------------------------------------
def _group_kernel(direction, n_segment, fold, bb, hw, dtype):
    T = n_segment

    def kernel(x_ref, o_ref):
        # x_ref / o_ref: (bb, T, C, HW)
        o_ref[...] = x_ref[...]                       # channels >= shifted fold(s)
        z = jnp.zeros((bb, 1, fold, hw), dtype)
        if direction == 'left':
            o_ref[:, :T - 1, :fold, :] = x_ref[:, 1:, :fold, :]
            o_ref[:, T - 1:, :fold, :] = z
        elif direction == 'right':
            o_ref[:, 1:, :fold, :] = x_ref[:, :T - 1, :fold, :]
            o_ref[:, :1, :fold, :] = z
        else:  # bidirectional
            o_ref[:, :T - 1, :fold, :] = x_ref[:, 1:, :fold, :]
            o_ref[:, T - 1:, :fold, :] = z
            o_ref[:, 1:, fold:2 * fold, :] = x_ref[:, :T - 1, fold:2 * fold, :]
            o_ref[:, :1, fold:2 * fold, :] = z

    return kernel


# --------------------------------------------------------------------------
# Path B kernels: one (1, C, HW) row per grid step, channel-sliced neighbours.
# --------------------------------------------------------------------------
def _row_kernel(direction, n_segment, fold):
    T = n_segment

    if direction == 'left':
        def kernel(cur_ref, nxt_ref, out_ref):
            t = pl.program_id(0) % T
            out_ref[...] = cur_ref[...]
            nxt = nxt_ref[:, :fold, :]
            out_ref[:, :fold, :] = jnp.where(t < T - 1, nxt, jnp.zeros_like(nxt))
        return kernel

    if direction == 'right':
        def kernel(cur_ref, prv_ref, out_ref):
            t = pl.program_id(0) % T
            out_ref[...] = cur_ref[...]
            prv = prv_ref[:, :fold, :]
            out_ref[:, :fold, :] = jnp.where(t > 0, prv, jnp.zeros_like(prv))
        return kernel

    def kernel(cur_ref, nxt_ref, prv_ref, out_ref):   # bidirectional
        t = pl.program_id(0) % T
        out_ref[...] = cur_ref[...]
        nxt = nxt_ref[:, :fold, :]
        prv = prv_ref[:, fold:2 * fold, :]
        out_ref[:, :fold, :] = jnp.where(t < T - 1, nxt, jnp.zeros_like(nxt))
        out_ref[:, fold:2 * fold, :] = jnp.where(t > 0, prv, jnp.zeros_like(prv))

    return kernel


@functools.partial(jax.jit,
                   static_argnames=("n_segment", "fold_div", "direction",
                                    "force_rowwise"))
def temporal_shift(x, n_segment=4, fold_div=8, direction='left',
                   force_rowwise=False):
    """Pallas implementation of TemporalShift.shift. x: (bz, nt, h, w)."""
    bz, nt, h, w = x.shape
    assert nt % n_segment == 0, "nt must be divisible by n_segment"
    assert n_segment >= 2, "temporal shift needs at least 2 segments"
    c = nt // n_segment
    fold = c // fold_div
    hw = h * w

    if fold == 0:
        # fold_div > c: shift degenerates to identity on all channels.
        return x

    itemsize = jnp.dtype(x.dtype).itemsize
    group_bytes = n_segment * c * hw * itemsize

    if (not force_rowwise) and group_bytes <= _GROUP_TILE_LIMIT:
        # ------------------ Path A: whole-group tiles ------------------
        # Fuse several batches into one tile (up to ~4 MiB) so small feature
        # maps still amortize the per-grid-step overhead.
        bb = 1
        for cand in range(bz, 0, -1):
            if bz % cand == 0 and cand * group_bytes <= _BATCH_GROUP_TARGET:
                bb = cand
                break

        xg = x.reshape(bz, n_segment, c, hw)
        spec = pl.BlockSpec((bb, n_segment, c, hw), lambda b: (b, 0, 0, 0))

        footprint = 2 * 2 * bb * group_bytes          # 2 streams x double buffer
        vmem_limit = _RAISED_VMEM_LIMIT if footprint > _DEFAULT_SCOPED_VMEM else None

        out = pl.pallas_call(
            _group_kernel(direction, n_segment, fold, bb, hw, x.dtype),
            out_shape=jax.ShapeDtypeStruct(xg.shape, x.dtype),
            grid=(bz // bb,),
            in_specs=[spec],
            out_specs=spec,
            compiler_params=pltpu.CompilerParams(
                dimension_semantics=("parallel",),
                vmem_limit_bytes=vmem_limit),
        )(xg)
        return out.reshape(bz, nt, h, w)

    # ------------------ Path B: per-row tiles ------------------
    T = n_segment
    packing = max(1, 4 // itemsize)
    sub_q = 8 * packing                               # sublane quantum for dtype

    def pad_ch(n):
        p = _round_up(n, sub_q)
        return c if p >= c else p

    xr = x.reshape(bz * T, c, hw)
    n_blocks = bz * T

    cur_spec = pl.BlockSpec((1, c, hw), lambda i: (i, 0, 0))

    def nxt_map(i):
        t = i % T
        # clamp at last segment of each batch (zeroed in-kernel)
        return (jnp.where(t == T - 1, i, i + 1), 0, 0)

    def prv_map(i):
        t = i % T
        # clamp at first segment of each batch (zeroed in-kernel)
        return (jnp.where(t == 0, i, i - 1), 0, 0)

    nxt_spec = pl.BlockSpec((1, pad_ch(fold), hw), nxt_map)
    prv_ch = fold if direction == 'right' else 2 * fold
    prv_spec = pl.BlockSpec((1, pad_ch(prv_ch), hw), prv_map)

    if direction == 'left':
        in_specs, operands = [cur_spec, nxt_spec], (xr, xr)
    elif direction == 'right':
        in_specs, operands = [cur_spec, prv_spec], (xr, xr)
    else:
        in_specs, operands = [cur_spec, nxt_spec, prv_spec], (xr, xr, xr)

    row_bytes = c * hw * itemsize
    footprint = 2 * (len(in_specs) + 1) * row_bytes   # crude upper bound
    vmem_limit = _RAISED_VMEM_LIMIT if footprint > _DEFAULT_SCOPED_VMEM else None

    out = pl.pallas_call(
        _row_kernel(direction, n_segment, fold),
        out_shape=jax.ShapeDtypeStruct((n_blocks, c, hw), x.dtype),
        grid=(n_blocks,),
        in_specs=in_specs,
        out_specs=cur_spec,
        compiler_params=pltpu.CompilerParams(
            dimension_semantics=("parallel",),
            vmem_limit_bytes=vmem_limit),
    )(*operands)
    return out.reshape(bz, nt, h, w)


def temporal_shift_ref(x, n_segment=4, fold_div=8, direction='left'):
    """Pure-JAX reference mirroring the PyTorch code."""
    bz, nt, h, w = x.shape
    c = nt // n_segment
    xv = x.reshape(bz, n_segment, c, h, w)
    fold = c // fold_div
    out = jnp.zeros_like(xv)
    if direction == 'left':
        out = out.at[:, :-1, :fold].set(xv[:, 1:, :fold])
        out = out.at[:, :, fold:].set(xv[:, :, fold:])
    elif direction == 'right':
        out = out.at[:, 1:, :fold].set(xv[:, :-1, :fold])
        out = out.at[:, :, fold:].set(xv[:, :, fold:])
    else:
        out = out.at[:, :-1, :fold].set(xv[:, 1:, :fold])
        out = out.at[:, 1:, fold:2 * fold].set(xv[:, :-1, fold:2 * fold])
        out = out.at[:, :, 2 * fold:].set(xv[:, :, 2 * fold:])
    return out.reshape(bz, nt, h, w)


if __name__ == "__main__":
    # Module defaults: n_segment=4, n_div=8.  nt = n_segment * c with c=8 so
    # fold = 1 (non-trivial shift).  x: (2, 32, 16, 16), hw=256 (lane-dense).
    n_segment, n_div = 4, 8
    bz, nt, h, w = 2, n_segment * 8, 16, 16

    key = jax.random.PRNGKey(0)
    x = jax.random.normal(key, (bz, nt, h, w), dtype=jnp.float32)

    for direction in ('left', 'right', 'bidirectional'):
        ref = temporal_shift_ref(x, n_segment=n_segment, fold_div=n_div,
                                 direction=direction)
        for force_rowwise in (False, True):       # exercise both paths
            out = temporal_shift(x, n_segment=n_segment, fold_div=n_div,
                                 direction=direction,
                                 force_rowwise=force_rowwise)
            out = jax.block_until_ready(out)
            assert out.shape == x.shape and out.dtype == x.dtype
            assert jnp.allclose(out, ref), (
                f"Pallas output differs: direction={direction}, "
                f"rowwise={force_rowwise}")

    print("KERNEL_OK")
</pallas_src>

<mosaic_0001>
module attributes {stable_mosaic.version = 11 : i64} {
  func.func @kernel(%arg0: i32, %arg1: memref<2x4x8x256xf32, #tpu.memory_space<vmem>>, %arg2: memref<2x4x8x256xf32, #tpu.memory_space<vmem>>) attributes {dimension_semantics = [#tpu.dimension_semantics<parallel>], iteration_bounds = array<i64: 1>, scalar_prefetch = 0 : i64, scratch_operands = 0 : i64, tpu.core_type = #tpu.core_type<tc>, window_params = [{transform_indices = @transform_0, window_bounds = array<i64: 2, 4, 8, 256>}, {transform_indices = @transform_1, window_bounds = array<i64: 2, 4, 8, 256>}]} {
    %c0 = arith.constant 0 : index
    %c0_0 = arith.constant 0 : index
    %c0_1 = arith.constant 0 : index
    %c0_2 = arith.constant 0 : index
    %0 = vector.load %arg1[%c0, %c0_0, %c0_1, %c0_2] : memref<2x4x8x256xf32, #tpu.memory_space<vmem>>, vector<2x4x8x256xf32>
    %c0_3 = arith.constant 0 : index
    %c0_4 = arith.constant 0 : index
    %c0_5 = arith.constant 0 : index
    %c0_6 = arith.constant 0 : index
    %1 = vector.load %arg2[%c0_3, %c0_4, %c0_5, %c0_6] : memref<2x4x8x256xf32, #tpu.memory_space<vmem>>, vector<2x4x8x256xf32>
    tpu.vector_store %arg2[%c0_3, %c0_4, %c0_5, %c0_6], %0 {strides = array<i32>} : memref<2x4x8x256xf32, #tpu.memory_space<vmem>>, vector<2x4x8x256xf32>,
    %cst = arith.constant 0.000000e+00 : f32
    %2 = vector.broadcast %cst : f32 to vector<2x1x1x256xf32>
    %c0_7 = arith.constant 0 : index
    %c1 = arith.constant 1 : index
    %c0_8 = arith.constant 0 : index
    %c0_9 = arith.constant 0 : index
    %3 = vector.load %arg1[%c0_7, %c1, %c0_8, %c0_9] : memref<2x4x8x256xf32, #tpu.memory_space<vmem>>, vector<2x3x1x256xf32>
    %c0_10 = arith.constant 0 : index
    %c0_11 = arith.constant 0 : index
    %c0_12 = arith.constant 0 : index
    %c0_13 = arith.constant 0 : index
    %4 = vector.load %arg2[%c0_10, %c0_11, %c0_12, %c0_13] : memref<2x4x8x256xf32, #tpu.memory_space<vmem>>, vector<2x3x1x256xf32>
    tpu.vector_store %arg2[%c0_10, %c0_11, %c0_12, %c0_13], %3 {strides = array<i32>} : memref<2x4x8x256xf32, #tpu.memory_space<vmem>>, vector<2x3x1x256xf32>,
    %c0_14 = arith.constant 0 : index
    %c3 = arith.constant 3 : index
    %c0_15 = arith.constant 0 : index
    %c0_16 = arith.constant 0 : index
    %5 = vector.load %arg2[%c0_14, %c3, %c0_15, %c0_16] : memref<2x4x8x256xf32, #tpu.memory_space<vmem>>, vector<2x1x1x256xf32>
    tpu.vector_store %arg2[%c0_14, %c3, %c0_15, %c0_16], %2 {strides = array<i32>} : memref<2x4x8x256xf32, #tpu.memory_space<vmem>>, vector<2x1x1x256xf32>,
    return
  }
  func.func @transform_0(%arg0: i32) -> (i32, i32, i32, i32) {
    %c0_i32 = arith.constant 0 : i32
    %c0_i32_0 = arith.constant 0 : i32
    %c0_i32_1 = arith.constant 0 : i32
    %c0_i32_2 = arith.constant 0 : i32
    return %arg0, %c0_i32, %c0_i32_0, %c0_i32_1 : i32, i32, i32, i32
  }
  func.func @transform_1(%arg0: i32) -> (i32, i32, i32, i32) {
    %c0_i32 = arith.constant 0 : i32
    %c0_i32_0 = arith.constant 0 : i32
    %c0_i32_1 = arith.constant 0 : i32
    %c0_i32_2 = arith.constant 0 : i32
    return %arg0, %c0_i32, %c0_i32_0, %c0_i32_1 : i32, i32, i32, i32
  }
}

</mosaic_0001>

<llo_original>
// kernel: temporal_shift.1
$region0: #{temporal_shift.1}
  #allocation0 [shape = 'u32[]', space=smem, size = 0x4, offset = 0x4, fixed_abs, tag = 'smem constant byte address 0x4 - core index']
  #allocation1 [shape = 'u32[144,128]{1,0:T(1,128)}', space=vmem, size = 0x12000, scoped, tag = 'internal scratch']
  %s0 = inlined_call_operand.vmem [shape: f32[2,4,8,256], index: 0, kind: input, shape index: {}]
  %s1 = inlined_call_operand.vmem [shape: f32[2,4,8,256], index: 1, kind: output, shape index: {}]
  %s2 = sld [smem:[#allocation0]]
  $region14: #{temporal_shift.1} parent=0
    _
  %s4 = ssub.s32 1, %s2
  %s5 = scalar_select 0, %s4, %s2
  // Predicated region
  $region2: #{temporal_shift.1} parent=0 // pred_check
    _
  $region3: #{temporal_shift.1} parent=0 // pred_check_branch
    %7 = sbr.rel (0) target = $region5
  $region4: #{temporal_shift.1} parent=0 // pred_region
    _
  $region5: #{temporal_shift.1} parent=0 // pred_fallthru
    _
  %v8 = vld [vmem:[%s0] sm:$0xff]
  %v9 = vld [vmem:[%s0 + $0x8] sm:$0xff]
  %v10 = vld [vmem:[%s0 + $0x10] sm:$0xff]
  %v11 = vld [vmem:[%s0 + $0x18] sm:$0xff]
  %v12 = vld [vmem:[%s0 + $0x20] sm:$0xff]
  %v13 = vld [vmem:[%s0 + $0x28] sm:$0xff]
  %v14 = vld [vmem:[%s0 + $0x30] sm:$0xff]
  %v15 = vld [vmem:[%s0 + $0x38] sm:$0xff]
  %v16 = vld [vmem:[%s0 + $0x40] sm:$0xff]
  %v17 = vld [vmem:[%s0 + $0x48] sm:$0xff]
  %v18 = vld [vmem:[%s0 + $0x50] sm:$0xff]
  %v19 = vld [vmem:[%s0 + $0x58] sm:$0xff]
  %v20 = vld [vmem:[%s0 + $0x60] sm:$0xff]
  %v21 = vld [vmem:[%s0 + $0x68] sm:$0xff]
  %v22 = vld [vmem:[%s0 + $0x70] sm:$0xff]
  %v23 = vld [vmem:[%s0 + $0x78] sm:$0xff]
  %24 = vst [vmem:[%s1] sm:$0xff] %v8
  %25 = vst [vmem:[%s1 + $0x8] sm:$0xff] %v9
  %26 = vst [vmem:[%s1 + $0x10] sm:$0xff] %v10
  %27 = vst [vmem:[%s1 + $0x18] sm:$0xff] %v11
  %28 = vst [vmem:[%s1 + $0x20] sm:$0xff] %v12
  %29 = vst [vmem:[%s1 + $0x28] sm:$0xff] %v13
  %30 = vst [vmem:[%s1 + $0x30] sm:$0xff] %v14
  %31 = vst [vmem:[%s1 + $0x38] sm:$0xff] %v15
  %32 = vst [vmem:[%s1 + $0x40] sm:$0xff] %v16
  %33 = vst [vmem:[%s1 + $0x48] sm:$0xff] %v17
  %34 = vst [vmem:[%s1 + $0x50] sm:$0xff] %v18
  %35 = vst [vmem:[%s1 + $0x58] sm:$0xff] %v19
  %36 = vst [vmem:[%s1 + $0x60] sm:$0xff] %v20
  %37 = vst [vmem:[%s1 + $0x68] sm:$0xff] %v21
  %38 = vst [vmem:[%s1 + $0x70] sm:$0xff] %v22
  %39 = vst [vmem:[%s1 + $0x78] sm:$0xff] %v23
  %s40 = scalar_lea.vmem %s0, 16
  %v41 = vld [vmem:[%s40] ss:$8 sm:$0x3]
  %s42 = scalar_lea.vmem %s40, 16
  %v43 = vld [vmem:[%s42] ss:$8 sm:$0x3]
  %s44 = scalar_lea.vmem %s40, 32
  %v45 = vld [vmem:[%s44] ss:$8 sm:$0x3]
  %s46 = scalar_lea.vmem %s40, 64
  %v47 = vld [vmem:[%s46] ss:$8 sm:$0x3]
  %s48 = scalar_lea.vmem %s40, 80
  %v49 = vld [vmem:[%s48] ss:$8 sm:$0x3]
  %s50 = scalar_lea.vmem %s40, 96
  %v51 = vld [vmem:[%s50] ss:$8 sm:$0x3]
  %v52 = vlaneseq
  %vm53 = vcmp.ge.s32.totalorder %v52, 0
  %vm54 = vcmp.lt.s32.totalorder %v52, 256
  %vm55 = vmand %vm53, %vm54
  %56 = vst.msk [vmem:[%s1] ss:$8 sm:$0x3] %vm55, %v41
  %57 = vst.msk [vmem:[%s1] ss:$8 sm:$0x0] %vm55, %v41
  %s58 = scalar_lea.vmem %s1, 16
  %59 = vst.msk [vmem:[%s58] ss:$8 sm:$0x3] %vm55, %v43
  %60 = vst.msk [vmem:[%s58] ss:$8 sm:$0x0] %vm55, %v43
  %s61 = scalar_lea.vmem %s1, 32
  %62 = vst.msk [vmem:[%s61] ss:$8 sm:$0x3] %vm55, %v45
  %63 = vst.msk [vmem:[%s61] ss:$8 sm:$0x0] %vm55, %v45
  %s64 = scalar_lea.vmem %s1, 64
  %65 = vst.msk [vmem:[%s64] ss:$8 sm:$0x3] %vm55, %v47
  %66 = vst.msk [vmem:[%s64] ss:$8 sm:$0x0] %vm55, %v47
  %s67 = scalar_lea.vmem %s1, 80
  %68 = vst.msk [vmem:[%s67] ss:$8 sm:$0x3] %vm55, %v49
  %69 = vst.msk [vmem:[%s67] ss:$8 sm:$0x0] %vm55, %v49
  %s70 = scalar_lea.vmem %s1, 96
  %71 = vst.msk [vmem:[%s70] ss:$8 sm:$0x3] %vm55, %v51
  %72 = vst.msk [vmem:[%s70] ss:$8 sm:$0x0] %vm55, %v51
  %s73 = scalar_lea.vmem %s1, 48
  %74 = vst.msk [vmem:[%s73] ss:$8 sm:$0x3] %vm55, 0.0
  %75 = vst.msk [vmem:[%s73] ss:$8 sm:$0x0] %vm55, 0.0
  %s76 = scalar_lea.vmem %s73, 64
  %77 = vst.msk [vmem:[%s76] ss:$8 sm:$0x3] %vm55, 0.0
  %78 = vst.msk [vmem:[%s76] ss:$8 sm:$0x0] %vm55, 0.0
  // Predicated region
  $region6: #{temporal_shift.1} parent=0 // pred_check
    _
  $region7: #{temporal_shift.1} parent=0 // pred_check_branch
    %80 = sbr.rel (0) target = $region9
  $region8: #{temporal_shift.1} parent=0 // pred_region
    _
  $region9: #{temporal_shift.1} parent=0 // pred_fallthru
    _
  // Predicated region
  $region10: #{temporal_shift.1} parent=0 // pred_check
    _
  $region11: #{temporal_shift.1} parent=0 // pred_check_branch
    %82 = sbr.rel (0) target = $region13
  $region12: #{temporal_shift.1} parent=0 // pred_region
    _
  $region13: #{temporal_shift.1} parent=0 // pred_fallthru
    _

</llo_original>
